<compile_context>
chip_gen: v6e
topology: v6e:2x2x1
jax: 0.10.0
libtpu: 0.0.40
codegen_flags: <defaults>
</compile_context>

<pallas_src>
import functools

import jax
import jax.numpy as jnp
from jax.experimental import pallas as pl
from jax.experimental.pallas import tpu as pltpu

_LANES = 128
_MIN_TILE_BYTES = 2 * 1024 * 1024        # never shrink a tile below this to split the grid
_VMEM_LIMIT_BYTES = 32 * 1024 * 1024     # 2 arrays x 2 buffers x 6 MiB tile = 24 MiB < 32 MiB


def _sublane_multiple(dtype) -> int:
    """Minimum sublane multiple for the TPU packed layout of `dtype`."""
    itemsize = jnp.dtype(dtype).itemsize
    if itemsize >= 4:
        return 8
    if itemsize == 2:
        return 16
    return 32  # int8 / fp8


def _chip_params():
    """Per-generation (input-tile byte budget, TensorCores-per-chip)."""
    kind = ""
    try:
        kind = jax.devices()[0].device_kind.lower()
    except Exception:  # no TPU visible at trace time: use conservative defaults
        pass
    is_v5e = ("v5e" in kind) or ("v5 lite" in kind) or ("v5litepod" in kind)
    num_tcs = 2 if "v7" in kind else 1          # v7x: 2 TensorCores per chip
    tile_bytes = (4 if is_v5e else 6) * 1024 * 1024
    return tile_bytes, num_tcs


def _jnp_activation(x, a_f32, activation_type):
    """Pure-jnp fallback (early-out for tiny inputs, ragged-tail epilogue)."""
    xf = x.astype(jnp.float32)
    ax = a_f32 * xf
    if activation_type == "tanh":
        y = jnp.tanh(ax)
    elif activation_type == "sigmoid":
        y = 0.5 * (jnp.tanh(0.5 * ax) + 1.0)
    elif activation_type == "relu":
        y = a_f32 * jnp.maximum(xf, 0.0)
    else:
        raise ValueError(f"Unsupported activation type: {activation_type}")
    return y.astype(x.dtype)


def _adaptive_activation_kernel(a_ref, x_ref, o_ref, *, activation_type):
    a = a_ref[0]                                 # f32 scalar parameter from SMEM
    x = x_ref[...].astype(jnp.float32)           # upcast: free VALU work under the HBM bound
    ax = a * x
    if activation_type == "tanh":
        y = jnp.tanh(ax)
    elif activation_type == "sigmoid":
        # sigmoid(z) == 0.5*(tanh(z/2)+1): a single EUP push instead of
        # exp + reciprocal, keeping the kernel memory-bound even on v7x.
        y = 0.5 * (jnp.tanh(0.5 * ax) + 1.0)
    elif activation_type == "relu":
        y = a * jnp.maximum(x, 0.0)
    else:
        raise ValueError(f"Unsupported activation type: {activation_type}")
    o_ref[...] = y.astype(o_ref.dtype)


def adaptive_activation(x, a, activation_type="tanh"):
    """Apply the adaptive activation elementwise via a Pallas TPU kernel.

    x: any-shaped float array (e.g. NCHW from the PyTorch module).
    a: scalar parameter (trainable in the original module).
    """
    if activation_type not in ("tanh", "sigmoid", "relu"):
        raise ValueError(f"Unsupported activation type: {activation_type}")

    orig_shape = x.shape
    dtype = x.dtype
    itemsize = jnp.dtype(dtype).itemsize
    sub = _sublane_multiple(dtype)
    a_f32 = jnp.asarray(a, dtype=jnp.float32)

    flat = x.reshape(-1)
    n = flat.shape[0]
    min_chunk = sub * _LANES
    bulk_n = (n // min_chunk) * min_chunk        # (sublane x 128)-divisible bulk
    rows = bulk_n // _LANES

    # Early-out: inputs that don't fill more than one aligned tile are strictly
    # cheaper as a fused XLA elementwise op (launch/DMA-setup cost dominates).
    if rows <= sub:
        return _jnp_activation(x, a_f32, activation_type)

    tile_bytes, num_tcs = _chip_params()
    row_bytes = _LANES * itemsize

    # Tile rows from the per-generation VMEM byte budget, sublane-aligned.
    target_rows = max(sub, (tile_bytes // row_bytes) // sub * sub)
    if num_tcs >= 2:
        # v7x: aim for >= 4 grid steps so each of the 2 TensorCores gets >= 2
        # steps and the double-buffer pipeline actually overlaps DMA/compute —
        # but never shrink a tile below ~2 MiB just to split.
        min_tile_rows = max(sub, (_MIN_TILE_BYTES // row_bytes) // sub * sub)
        split_rows = ((pl.cdiv(rows, 4) + sub - 1) // sub) * sub
        cap_rows = max(split_rows, min_tile_rows)
        tile_rows = min(target_rows, cap_rows, rows)
    else:
        # v5e / v6e: 1 TC per chip, forcing extra grid steps buys nothing.
        tile_rows = min(target_rows, rows)
    grid = (pl.cdiv(rows, tile_rows),)           # partial edge block is fine: elementwise

    x2d = (flat[:bulk_n] if bulk_n != n else flat).reshape(rows, _LANES)
    a_arr = a_f32.reshape(1)                     # f32 in SMEM regardless of x dtype

    kernel = functools.partial(
        _adaptive_activation_kernel, activation_type=activation_type
    )

    n_transc = bulk_n if activation_type in ("tanh", "sigmoid") else 0
    cost = pl.CostEstimate(
        flops=2 * bulk_n,
        transcendentals=n_transc,
        bytes_accessed=2 * bulk_n * itemsize,
    )

    out2d = pl.pallas_call(
        kernel,
        out_shape=jax.ShapeDtypeStruct((rows, _LANES), dtype),
        grid=grid,
        in_specs=[
            pl.BlockSpec(memory_space=pltpu.SMEM),                 # scalar `a` (f32)
            pl.BlockSpec((tile_rows, _LANES), lambda i: (i, 0)),   # x tile
        ],
        out_specs=pl.BlockSpec((tile_rows, _LANES), lambda i: (i, 0)),
        compiler_params=pltpu.CompilerParams(
            dimension_semantics=("parallel",),
            vmem_limit_bytes=_VMEM_LIMIT_BYTES,
        ),
        cost_estimate=cost,
    )(a_arr, x2d)

    out_flat = out2d.reshape(-1)
    if bulk_n != n:
        # Ragged tail (< sub*128 elements): tiny jnp epilogue instead of a
        # whole-array pad + output slice (each of those is a full HBM copy).
        tail_out = _jnp_activation(flat[bulk_n:], a_f32, activation_type)
        out_flat = jnp.concatenate([out_flat, tail_out])
    return out_flat.reshape(orig_shape)


def _reference(x, a, activation_type):
    """Direct port of the PyTorch module's forward (computed in f32)."""
    xf = x.astype(jnp.float32)
    a = jnp.float32(a)
    if activation_type == "tanh":
        return jnp.tanh(a * xf)
    elif activation_type == "sigmoid":
        return 1.0 / (1.0 + jnp.exp(-a * xf))
    else:
        return a * jnp.maximum(xf, 0.0)


if __name__ == "__main__":
    key = jax.random.PRNGKey(0)
    init_value = 1.0  # matches nn.Parameter(torch.tensor(init_value))
    ok = True

    def _check(y, x, act, atol, rtol):
        ref = _reference(x, init_value, act)
        return bool(
            y.shape == x.shape
            and jnp.allclose(y.astype(jnp.float32), ref, atol=atol, rtol=rtol)
        )

    # 1) NCHW conv-style activation input (already (8x128)-divisible -> no tail).
    x = jax.random.normal(key, (2, 4, 16, 16), dtype=jnp.float32)
    for act in ("tanh", "sigmoid", "relu"):
        y = jax.block_until_ready(adaptive_activation(x, init_value, act))
        ok &= _check(y, x, act, atol=1e-5, rtol=1e-5)

    # 2) Awkward shape -> exercises the bulk-kernel + ragged-tail epilogue path.
    k2 = jax.random.fold_in(key, 1)
    x_odd = jax.random.normal(k2, (3, 5, 17, 19), dtype=jnp.float32)
    for act in ("tanh", "sigmoid"):
        y_odd = jax.block_until_ready(adaptive_activation(x_odd, init_value, act))
        ok &= _check(y_odd, x_odd, act, atol=1e-5, rtol=1e-5)

    # 3) bf16 input -> exercises (16,128) sublane multiple + f32 SMEM scalar +
    #    in-kernel f32 upcast path.
    k3 = jax.random.fold_in(key, 2)
    x_bf = jax.random.normal(k3, (2, 4, 32, 32), dtype=jnp.bfloat16)
    y_bf = jax.block_until_ready(adaptive_activation(x_bf, init_value, "tanh"))
    ok &= _check(y_bf, x_bf, "tanh", atol=2e-2, rtol=2e-2)

    # 4) Tiny input -> exercises the early-out (pure-jnp) path.
    k4 = jax.random.fold_in(key, 3)
    x_tiny = jax.random.normal(k4, (2, 3), dtype=jnp.float32)
    y_tiny = jax.block_until_ready(adaptive_activation(x_tiny, init_value, "sigmoid"))
    ok &= _check(y_tiny, x_tiny, "sigmoid", atol=1e-5, rtol=1e-5)

    assert ok, "AdaptiveActivation Pallas kernel does not match the reference"
    print("KERNEL_OK")
</pallas_src>

<mosaic_0001>
module attributes {stable_mosaic.version = 11 : i64} {
  func.func @_adaptive_activation_kernel(%arg0: i32, %arg1: memref<1xf32, #tpu.memory_space<smem>>, %arg2: memref<16x128xf32, #tpu.memory_space<vmem>>, %arg3: memref<16x128xf32, #tpu.memory_space<vmem>>) attributes {dimension_semantics = [#tpu.dimension_semantics<parallel>], iteration_bounds = array<i64: 1>, scalar_prefetch = 0 : i64, scratch_operands = 0 : i64, tpu.core_type = #tpu.core_type<tc>, window_params = [{transform_indices = @transform_0, window_bounds = array<i64: 1>}, {transform_indices = @transform_1, window_bounds = array<i64: 16, 128>}, {transform_indices = @transform_2, window_bounds = array<i64: 16, 128>}]} {
    %c0 = arith.constant 0 : index
    %0 = memref.load %arg1[%c0] : memref<1xf32, #tpu.memory_space<smem>>
    %c0_0 = arith.constant 0 : index
    %c0_1 = arith.constant 0 : index
    %1 = vector.load %arg2[%c0_0, %c0_1] : memref<16x128xf32, #tpu.memory_space<vmem>>, vector<16x128xf32>
    %2 = vector.broadcast %0 : f32 to vector<16x128xf32>
    %3 = arith.mulf %2, %1 : vector<16x128xf32>
    %4 = math.tanh %3 : vector<16x128xf32>
    %c0_2 = arith.constant 0 : index
    %c0_3 = arith.constant 0 : index
    %5 = vector.load %arg3[%c0_2, %c0_3] : memref<16x128xf32, #tpu.memory_space<vmem>>, vector<16x128xf32>
    tpu.vector_store %arg3[%c0_2, %c0_3], %4 {strides = array<i32>} : memref<16x128xf32, #tpu.memory_space<vmem>>, vector<16x128xf32>,
    return
  }
  func.func @transform_0(%arg0: i32) -> i32 {
    %c0_i32 = arith.constant 0 : i32
    %c0_i32_0 = arith.constant 0 : i32
    return %c0_i32 : i32
  }
  func.func @transform_1(%arg0: i32) -> (i32, i32) {
    %c0_i32 = arith.constant 0 : i32
    %c0_i32_0 = arith.constant 0 : i32
    return %arg0, %c0_i32 : i32, i32
  }
  func.func @transform_2(%arg0: i32) -> (i32, i32) {
    %c0_i32 = arith.constant 0 : i32
    %c0_i32_0 = arith.constant 0 : i32
    return %arg0, %c0_i32 : i32, i32
  }
}

</mosaic_0001>

<llo_original>
// kernel: tpu_custom_call.1
$region0: #{tpu_custom_call.1}
  #allocation0 [shape = 'u32[]', space=smem, size = 0x4, offset = 0x4, fixed_abs, tag = 'smem constant byte address 0x4 - core index']
  #allocation1 [shape = 'u32[144,128]{1,0:T(1,128)}', space=vmem, size = 0x12000, scoped, tag = 'internal scratch']
  #allocation2 [shape = 'f32[1]{0:T(128)S(6)}', space=smem, size = 0x200, scoped, tag = 'scoped memory for tpu_custom_call.1']
  %s0 = inlined_call_operand.<no memory space> [shape: f32[1], index: 0, kind: input, shape index: {}]
  %s1 = inlined_call_operand.hbm [shape: f32[16,128], index: 1, kind: input, shape index: {}]
  %s2 = inlined_call_operand.hbm [shape: f32[16,128], index: 2, kind: output, shape index: {}]
  %s3 = sld [smem:[#allocation0]]
  $region22: #{tpu_custom_call.1} parent=0
    _
  %s5 = ssub.s32 1, %s3
  %s6 = scalar_select 0, %s5, %s3
  %7 = sst [smem:[#allocation2]] %s0
  $region1: #{tpu_custom_call.1} parent=0
    #allocation3 [shape = 'u8[8192]{0}', space=vmem, size = 0x2000, scoped, tag = 'input window, operand 1, single buffered']
    #allocation4 [shape = 's32[1]{0}', space=sflag, size = 0x4, scoped, tag = 'scoped memory for tpu_custom_call.1']
    #allocation5 [shape = 's32[1]{0}', space=sflag, size = 0x4, scoped, tag = 'scoped memory for tpu_custom_call.1']
    #allocation6 [shape = 'u8[8192]{0}', space=vmem, size = 0x2000, scoped, tag = 'output window, operand 0, single buffered']
    %8 = vsyncpa [#allocation4], 0
    %9 = vsyncpa [#allocation5], 0
    // Predicated region
    $region2: #{tpu_custom_call.1} parent=1 // pred_check
      _
    $region3: #{tpu_custom_call.1} parent=1 // pred_check_branch
      %11 = sbr.rel (0) target = $region5
    $region4: #{tpu_custom_call.1} parent=1 // pred_region
      _
    $region5: #{tpu_custom_call.1} parent=1 // pred_fallthru
      _
    // Predicated region
    $region6: #{tpu_custom_call.1} parent=1 // pred_check
      _
    $region7: #{tpu_custom_call.1} parent=1 // pred_check_branch
      %13 = sbr.rel (0) target = $region9
    $region8: #{tpu_custom_call.1} parent=1 // pred_region
      %s15 = ssub.s32 256, 256
      %16 = vsyncadd [#allocation4], %s15
      %s17 = sshll.u32 [#allocation3], 4
      %s18 = int_to_ptr.vmem [resolvable:$true] %s17
      %23 = dma.hbm_to_vmem [thread:$0]  %s1, 256, %s18, [#allocation4], 128, 128, 8
    $region9: #{tpu_custom_call.1} parent=1 // pred_fallthru
      _
    // Predicated region
    $region10: #{tpu_custom_call.1} parent=1 // pred_check
      _
    $region11: #{tpu_custom_call.1} parent=1 // pred_check_branch
      %25 = sbr.rel (0) target = $region13
    $region12: #{tpu_custom_call.1} parent=1 // pred_region
      %26 = dma.done [#allocation4], 256
    $region13: #{tpu_custom_call.1} parent=1 // pred_fallthru
      _
    %s27 = sld [smem:[#allocation2]]
    %v28 = vld [vmem:[#allocation3] sm:$0xff]
    %v29 = vld [vmem:[#allocation3 + $0x8] sm:$0xff]
    %v30 = vstv %s27
    %v31 = vmul.f32 %v30, %v28
    %v32 = vmul.f32 %v30, %v29
    %v33 = vtanh.pop %v31
    %v34 = vtanh.pop %v32
    %35 = vst [vmem:[#allocation6] sm:$0xff] %v33
    %36 = vst [vmem:[#allocation6 + $0x8] sm:$0xff] %v34
    // Predicated region
    $region14: #{tpu_custom_call.1} parent=1 // pred_check
      _
    $region15: #{tpu_custom_call.1} parent=1 // pred_check_branch
      %38 = sbr.rel (0) target = $region17
    $region16: #{tpu_custom_call.1} parent=1 // pred_region
      %s40 = ssub.s32 256, 256
      %41 = vsyncadd [#allocation5], %s40
      %s42 = sshll.u32 [#allocation6], 4
      %s43 = int_to_ptr.vmem [resolvable:$true] %s42
      %48 = dma.vmem_to_hbm [thread:$0]  %s43, 256, %s2, [#allocation5], 128, 128, 8
    $region17: #{tpu_custom_call.1} parent=1 // pred_fallthru
      _
    // Predicated region
    $region18: #{tpu_custom_call.1} parent=1 // pred_check
      _
    $region19: #{tpu_custom_call.1} parent=1 // pred_check_branch
      %50 = sbr.rel (0) target = $region21
    $region20: #{tpu_custom_call.1} parent=1 // pred_region
      %51 = dma.done [#allocation5], 256
    $region21: #{tpu_custom_call.1} parent=1 // pred_fallthru
      _
    %52 = vsyncpa [#allocation4], 1
    %53 = vsyncpa [#allocation5], 1

</llo_original>
